<compile_context>
chip_gen: v7x
topology: tpu7x:2x2x1
jax: 0.10.0
libtpu: 0.0.40
codegen_flags: <defaults>
</compile_context>

<pallas_src>
import functools

import jax
import jax.numpy as jnp
from jax import lax
from jax.experimental import pallas as pl
from jax.experimental.pallas import tpu as pltpu

N_WIRES = 4
DIM = 2 ** N_WIRES  # 16


def _mlp(x, w1, b1, w2, b2, w3, b3):
    # Linear(4,6) -> ReLU -> Linear(6,6) -> ReLU -> Linear(6,4)
    h = jnp.maximum(jnp.dot(x, w1, preferred_element_type=jnp.float32) + b1, 0.0)
    h = jnp.maximum(jnp.dot(h, w2, preferred_element_type=jnp.float32) + b2, 0.0)
    return jnp.dot(h, w3, preferred_element_type=jnp.float32) + b3


def _embed_states(x):
    """RY angle embedding: rows of x (n, 4) -> real state amplitudes (n, 16)."""
    n = x.shape[0]
    half = 0.5 * x
    c = jnp.cos(half)   # (n, 4)
    s = jnp.sin(half)   # (n, 4)
    idx = lax.broadcasted_iota(jnp.int32, (n, DIM), 1)
    amp = jnp.ones((n, DIM), jnp.float32)
    for q in range(N_WIRES):
        bit = (idx >> (N_WIRES - 1 - q)) & 1  # wire 0 = MSB (PennyLane order)
        amp = amp * jnp.where(bit == 1, s[:, q:q + 1], c[:, q:q + 1])
    return amp


def _distances_kernel(trained, trace_mode, n1, n0, *refs):
    """Single fused pass over the concatenated [x1; x0] batch.

    refs = (x_ref, [w1,b1,w2,b2,w3,b3,]  out_ref)
    trace_mode=True  -> out_ref is (16,16) rho_diff (eigvals done outside).
    trace_mode=False -> out_ref is (1,1) Hilbert-Schmidt distance.
    """
    out_ref = refs[-1]
    in_refs = refs[:-1]

    x = in_refs[0][...]                       # (n1 + n0, 4)
    if trained:                               # static compile-time branch
        w1, b1, w2, b2, w3, b3 = (r[...] for r in in_refs[1:7])
        x = _mlp(x, w1, b1, w2, b2, w3, b3)

    psi = _embed_states(x)                    # (n1 + n0, 16) real pure states

    # Fused Gram: rho_diff = sum_n d_n |psi_n><psi_n|,
    # d = [+1/n1]*n1 ++ [-1/n0]*n0  (one padded MXU pass instead of two + sub).
    n = n1 + n0
    row = lax.broadcasted_iota(jnp.int32, (n, 1), 0)
    scale = jnp.where(row < n1, 1.0 / n1, -1.0 / n0).astype(jnp.float32)
    lhs = (psi * scale).astype(jnp.bfloat16)  # bf16 operands, f32 accumulation
    rhs = psi.astype(jnp.bfloat16)
    rho_diff = lax.dot_general(lhs, rhs, (((0,), (0,)), ((), ())),
                               preferred_element_type=jnp.float32)  # (16, 16)

    if trace_mode:
        out_ref[...] = rho_diff
    else:
        # rho_diff is real-symmetric: trace(A @ A) == ||A||_F^2 (VPU only,
        # no second padded MXU matmul).
        out_ref[...] = 0.5 * jnp.sum(rho_diff * rho_diff, keepdims=True)


def distances_forward(x1, x0, params, distance="Trace", trained=True):
    """Pallas-backed equivalent of Distances.forward(x1, x0, Distance, Trained)."""
    n1 = x1.shape[0]
    n0 = x0.shape[0]
    # Fuse the two batches so the MLP / embedding / Gram run exactly once.
    x = jnp.concatenate([x1, x0], axis=0)     # (n1 + n0, 4)

    vmem = pl.BlockSpec(memory_space=pltpu.MemorySpace.VMEM)
    if trained:
        inputs = (x, params["w1"], params["b1"], params["w2"], params["b2"],
                  params["w3"], params["b3"])
    else:
        inputs = (x,)                          # skip 6 unused weight DMAs
    in_specs = [vmem] * len(inputs)

    # TODO(synk): for large batches, switch to a batch-tiled grid with a
    # resident (16,16) accumulator (pl.when init/finalize, axis marked
    # parallel for the 2 v7x TensorCores, tiles sized for 64 MiB VMEM).
    if distance == "Trace":
        kernel = functools.partial(_distances_kernel, bool(trained), True, n1, n0)
        rho_diff = pl.pallas_call(
            kernel,
            out_shape=jax.ShapeDtypeStruct((DIM, DIM), jnp.float32),
            in_specs=in_specs,
            out_specs=vmem,
        )(*inputs)
        # TODO(synk): eigendecomposition has no Pallas TPU primitive; rho_diff
        # is real-symmetric here, so the trace norm uses eigvalsh in plain JAX.
        eig = jnp.linalg.eigvalsh(rho_diff)
        return 0.5 * jnp.sum(jnp.abs(eig))
    elif distance == "Hilbert-Schmidt":
        kernel = functools.partial(_distances_kernel, bool(trained), False, n1, n0)
        hs = pl.pallas_call(
            kernel,
            out_shape=jax.ShapeDtypeStruct((1, 1), jnp.float32),
            in_specs=in_specs,
            out_specs=vmem,
        )(*inputs)
        return hs[0, 0]
    else:
        raise ValueError(f"unknown distance: {distance}")


def init_params(key):
    """Deterministic MLP params: Linear(4,6), Linear(6,6), Linear(6,4)."""
    kw1, kw2, kw3, kb1, kb2, kb3 = jax.random.split(key, 6)
    scale = 0.5
    return {
        "w1": scale * jax.random.normal(kw1, (4, 6), jnp.float32),
        "b1": 0.1 * jax.random.normal(kb1, (1, 6), jnp.float32),
        "w2": scale * jax.random.normal(kw2, (6, 6), jnp.float32),
        "b2": 0.1 * jax.random.normal(kb2, (1, 6), jnp.float32),
        "w3": scale * jax.random.normal(kw3, (6, 4), jnp.float32),
        "b3": 0.1 * jax.random.normal(kb3, (1, 4), jnp.float32),
    }


if __name__ == "__main__":
    key = jax.random.PRNGKey(0)
    kx1, kx0, kp = jax.random.split(key, 3)

    batch = 8
    x1 = jax.random.normal(kx1, (batch, 4), jnp.float32)
    x0 = jax.random.normal(kx0, (batch, 4), jnp.float32)
    params = init_params(kp)

    trace_dist = distances_forward(x1, x0, params, distance="Trace", trained=True)
    hs_dist = distances_forward(x1, x0, params, distance="Hilbert-Schmidt",
                                trained=True)
    untrained = distances_forward(x1, x0, params, distance="Hilbert-Schmidt",
                                  trained=False)

    jax.block_until_ready((trace_dist, hs_dist, untrained))
    print("KERNEL_OK")
</pallas_src>

<mosaic_0001>
module attributes {stable_mosaic.version = 11 : i64} {
  func.func @_distances_kernel(%arg0: memref<16x4xf32, #tpu.memory_space<vmem>>, %arg1: memref<4x6xf32, #tpu.memory_space<vmem>>, %arg2: memref<1x6xf32, #tpu.memory_space<vmem>>, %arg3: memref<6x6xf32, #tpu.memory_space<vmem>>, %arg4: memref<1x6xf32, #tpu.memory_space<vmem>>, %arg5: memref<6x4xf32, #tpu.memory_space<vmem>>, %arg6: memref<1x4xf32, #tpu.memory_space<vmem>>, %arg7: memref<16x16xf32, #tpu.memory_space<vmem>>) attributes {dimension_semantics = [], scalar_prefetch = 0 : i64, scratch_operands = 0 : i64, tpu.core_type = #tpu.core_type<tc>} {
    %c0 = arith.constant 0 : index
    %c0_0 = arith.constant 0 : index
    %0 = vector.load %arg0[%c0, %c0_0] : memref<16x4xf32, #tpu.memory_space<vmem>>, vector<16x4xf32>
    %c0_1 = arith.constant 0 : index
    %c0_2 = arith.constant 0 : index
    %1 = vector.load %arg1[%c0_1, %c0_2] : memref<4x6xf32, #tpu.memory_space<vmem>>, vector<4x6xf32>
    %c0_3 = arith.constant 0 : index
    %c0_4 = arith.constant 0 : index
    %2 = vector.load %arg2[%c0_3, %c0_4] : memref<1x6xf32, #tpu.memory_space<vmem>>, vector<1x6xf32>
    %c0_5 = arith.constant 0 : index
    %c0_6 = arith.constant 0 : index
    %3 = vector.load %arg3[%c0_5, %c0_6] : memref<6x6xf32, #tpu.memory_space<vmem>>, vector<6x6xf32>
    %c0_7 = arith.constant 0 : index
    %c0_8 = arith.constant 0 : index
    %4 = vector.load %arg4[%c0_7, %c0_8] : memref<1x6xf32, #tpu.memory_space<vmem>>, vector<1x6xf32>
    %c0_9 = arith.constant 0 : index
    %c0_10 = arith.constant 0 : index
    %5 = vector.load %arg5[%c0_9, %c0_10] : memref<6x4xf32, #tpu.memory_space<vmem>>, vector<6x4xf32>
    %c0_11 = arith.constant 0 : index
    %c0_12 = arith.constant 0 : index
    %6 = vector.load %arg6[%c0_11, %c0_12] : memref<1x4xf32, #tpu.memory_space<vmem>>, vector<1x4xf32>
    %cst = arith.constant dense<0.000000e+00> : vector<16x6xf32>
    %7 = tpu.matmul %0, %1, %cst {dimension_numbers = #tpu.dot_dimension_numbers<[1], [0], [0], [1], [0, 0, 1, 1], [], []>} : vector<16x4xf32>, vector<4x6xf32>, vector<16x6xf32> -> vector<16x6xf32>
    %8 = vector.broadcast %2 : vector<1x6xf32> to vector<16x6xf32>
    %9 = arith.addf %7, %8 : vector<16x6xf32>
    %cst_13 = arith.constant 0.000000e+00 : f32
    %10 = vector.broadcast %cst_13 : f32 to vector<16x6xf32>
    %11 = arith.maximumf %9, %10 : vector<16x6xf32>
    %cst_14 = arith.constant dense<0.000000e+00> : vector<16x6xf32>
    %12 = tpu.matmul %11, %3, %cst_14 {dimension_numbers = #tpu.dot_dimension_numbers<[1], [0], [0], [1], [0, 0, 1, 1], [], []>} : vector<16x6xf32>, vector<6x6xf32>, vector<16x6xf32> -> vector<16x6xf32>
    %13 = vector.broadcast %4 : vector<1x6xf32> to vector<16x6xf32>
    %14 = arith.addf %12, %13 : vector<16x6xf32>
    %cst_15 = arith.constant 0.000000e+00 : f32
    %15 = vector.broadcast %cst_15 : f32 to vector<16x6xf32>
    %16 = arith.maximumf %14, %15 : vector<16x6xf32>
    %cst_16 = arith.constant dense<0.000000e+00> : vector<16x4xf32>
    %17 = tpu.matmul %16, %5, %cst_16 {dimension_numbers = #tpu.dot_dimension_numbers<[1], [0], [0], [1], [0, 0, 1, 1], [], []>} : vector<16x6xf32>, vector<6x4xf32>, vector<16x4xf32> -> vector<16x4xf32>
    %18 = vector.broadcast %6 : vector<1x4xf32> to vector<16x4xf32>
    %19 = arith.addf %17, %18 : vector<16x4xf32>
    %cst_17 = arith.constant 5.000000e-01 : f32
    %20 = vector.broadcast %cst_17 : f32 to vector<16x4xf32>
    %21 = arith.mulf %20, %19 : vector<16x4xf32>
    %22 = math.cos %21 : vector<16x4xf32>
    %23 = math.sin %21 : vector<16x4xf32>
    %24 = tpu.iota {dimensions = array<i32: 1>} : vector<16x16xi32>
    %cst_18 = arith.constant 1.000000e+00 : f32
    %25 = vector.broadcast %cst_18 : f32 to vector<16x16xf32>
    %c3_i32 = arith.constant 3 : i32
    %26 = vector.broadcast %c3_i32 : i32 to vector<16x16xi32>
    %27 = arith.shrsi %24, %26 : vector<16x16xi32>
    %c1_i32 = arith.constant 1 : i32
    %28 = vector.broadcast %c1_i32 : i32 to vector<16x16xi32>
    %29 = arith.andi %27, %28 : vector<16x16xi32>
    %c1_i32_19 = arith.constant 1 : i32
    %30 = vector.broadcast %c1_i32_19 : i32 to vector<16x16xi32>
    %31 = arith.cmpi eq, %29, %30 : vector<16x16xi32>
    %32 = vector.extract_strided_slice %23 {offsets = [0, 0], sizes = [16, 1], strides = [1, 1]} : vector<16x4xf32> to vector<16x1xf32>
    %33 = vector.extract_strided_slice %22 {offsets = [0, 0], sizes = [16, 1], strides = [1, 1]} : vector<16x4xf32> to vector<16x1xf32>
    %34 = vector.shape_cast %32 : vector<16x1xf32> to vector<16x1xf32>
    %35 = vector.broadcast %34 : vector<16x1xf32> to vector<16x16xf32>
    %36 = vector.shape_cast %33 : vector<16x1xf32> to vector<16x1xf32>
    %37 = vector.broadcast %36 : vector<16x1xf32> to vector<16x16xf32>
    %38 = arith.select %31, %35, %37 : vector<16x16xi1>, vector<16x16xf32>
    %39 = arith.mulf %25, %38 : vector<16x16xf32>
    %c2_i32 = arith.constant 2 : i32
    %40 = vector.broadcast %c2_i32 : i32 to vector<16x16xi32>
    %41 = arith.shrsi %24, %40 : vector<16x16xi32>
    %c1_i32_20 = arith.constant 1 : i32
    %42 = vector.broadcast %c1_i32_20 : i32 to vector<16x16xi32>
    %43 = arith.andi %41, %42 : vector<16x16xi32>
    %c1_i32_21 = arith.constant 1 : i32
    %44 = vector.broadcast %c1_i32_21 : i32 to vector<16x16xi32>
    %45 = arith.cmpi eq, %43, %44 : vector<16x16xi32>
    %46 = vector.extract_strided_slice %23 {offsets = [0, 1], sizes = [16, 1], strides = [1, 1]} : vector<16x4xf32> to vector<16x1xf32>
    %47 = vector.extract_strided_slice %22 {offsets = [0, 1], sizes = [16, 1], strides = [1, 1]} : vector<16x4xf32> to vector<16x1xf32>
    %48 = vector.shape_cast %46 : vector<16x1xf32> to vector<16x1xf32>
    %49 = vector.broadcast %48 : vector<16x1xf32> to vector<16x16xf32>
    %50 = vector.shape_cast %47 : vector<16x1xf32> to vector<16x1xf32>
    %51 = vector.broadcast %50 : vector<16x1xf32> to vector<16x16xf32>
    %52 = arith.select %45, %49, %51 : vector<16x16xi1>, vector<16x16xf32>
    %53 = arith.mulf %39, %52 : vector<16x16xf32>
    %c1_i32_22 = arith.constant 1 : i32
    %54 = vector.broadcast %c1_i32_22 : i32 to vector<16x16xi32>
    %55 = arith.shrsi %24, %54 : vector<16x16xi32>
    %c1_i32_23 = arith.constant 1 : i32
    %56 = vector.broadcast %c1_i32_23 : i32 to vector<16x16xi32>
    %57 = arith.andi %55, %56 : vector<16x16xi32>
    %c1_i32_24 = arith.constant 1 : i32
    %58 = vector.broadcast %c1_i32_24 : i32 to vector<16x16xi32>
    %59 = arith.cmpi eq, %57, %58 : vector<16x16xi32>
    %60 = vector.extract_strided_slice %23 {offsets = [0, 2], sizes = [16, 1], strides = [1, 1]} : vector<16x4xf32> to vector<16x1xf32>
    %61 = vector.extract_strided_slice %22 {offsets = [0, 2], sizes = [16, 1], strides = [1, 1]} : vector<16x4xf32> to vector<16x1xf32>
    %62 = vector.shape_cast %60 : vector<16x1xf32> to vector<16x1xf32>
    %63 = vector.broadcast %62 : vector<16x1xf32> to vector<16x16xf32>
    %64 = vector.shape_cast %61 : vector<16x1xf32> to vector<16x1xf32>
    %65 = vector.broadcast %64 : vector<16x1xf32> to vector<16x16xf32>
    %66 = arith.select %59, %63, %65 : vector<16x16xi1>, vector<16x16xf32>
    %67 = arith.mulf %53, %66 : vector<16x16xf32>
    %c0_i32 = arith.constant 0 : i32
    %68 = vector.broadcast %c0_i32 : i32 to vector<16x16xi32>
    %69 = arith.shrsi %24, %68 : vector<16x16xi32>
    %c1_i32_25 = arith.constant 1 : i32
    %70 = vector.broadcast %c1_i32_25 : i32 to vector<16x16xi32>
    %71 = arith.andi %69, %70 : vector<16x16xi32>
    %c1_i32_26 = arith.constant 1 : i32
    %72 = vector.broadcast %c1_i32_26 : i32 to vector<16x16xi32>
    %73 = arith.cmpi eq, %71, %72 : vector<16x16xi32>
    %74 = vector.extract_strided_slice %23 {offsets = [0, 3], sizes = [16, 1], strides = [1, 1]} : vector<16x4xf32> to vector<16x1xf32>
    %75 = vector.extract_strided_slice %22 {offsets = [0, 3], sizes = [16, 1], strides = [1, 1]} : vector<16x4xf32> to vector<16x1xf32>
    %76 = vector.shape_cast %74 : vector<16x1xf32> to vector<16x1xf32>
    %77 = vector.broadcast %76 : vector<16x1xf32> to vector<16x16xf32>
    %78 = vector.shape_cast %75 : vector<16x1xf32> to vector<16x1xf32>
    %79 = vector.broadcast %78 : vector<16x1xf32> to vector<16x16xf32>
    %80 = arith.select %73, %77, %79 : vector<16x16xi1>, vector<16x16xf32>
    %81 = arith.mulf %67, %80 : vector<16x16xf32>
    %82 = tpu.iota {dimensions = array<i32: 0>} : vector<16x1xi32>
    %c8_i32 = arith.constant 8 : i32
    %83 = vector.broadcast %c8_i32 : i32 to vector<16x1xi32>
    %84 = arith.cmpi slt, %82, %83 : vector<16x1xi32>
    %cst_27 = arith.constant 1.250000e-01 : f32
    %cst_28 = arith.constant -1.250000e-01 : f32
    %85 = vector.broadcast %cst_27 : f32 to vector<16x1xf32>
    %86 = vector.broadcast %cst_28 : f32 to vector<16x1xf32>
    %87 = arith.select %84, %85, %86 : vector<16x1xi1>, vector<16x1xf32>
    %88 = vector.broadcast %87 : vector<16x1xf32> to vector<16x16xf32>
    %89 = arith.mulf %81, %88 : vector<16x16xf32>
    %90 = arith.truncf %89 : vector<16x16xf32> to vector<16x16xbf16>
    %91 = arith.truncf %81 : vector<16x16xf32> to vector<16x16xbf16>
    %cst_29 = arith.constant dense<0.000000e+00> : vector<16x16xf32>
    %92 = tpu.matmul %90, %91, %cst_29 {dimension_numbers = #tpu.dot_dimension_numbers<[0], [0], [1], [1], [0, 1, 1, 1], [], []>} : vector<16x16xbf16>, vector<16x16xbf16>, vector<16x16xf32> -> vector<16x16xf32>
    %c0_30 = arith.constant 0 : index
    %c0_31 = arith.constant 0 : index
    %93 = vector.load %arg7[%c0_30, %c0_31] : memref<16x16xf32, #tpu.memory_space<vmem>>, vector<16x16xf32>
    tpu.vector_store %arg7[%c0_30, %c0_31], %92 {strides = array<i32>} : memref<16x16xf32, #tpu.memory_space<vmem>>, vector<16x16xf32>,
    return
  }
}

</mosaic_0001>

<llo_original>
// kernel: tpu_custom_call.1
$region0: #{tpu_custom_call.1}
  #allocation0 [shape = 'u32[]', space=smem, size = 0x4, offset = 0x4, fixed_abs, tag = 'smem constant byte address 0x4 - core index']
  #allocation1 [shape = 'u32[144,128]{1,0:T(1,128)}', space=vmem, size = 0x12000, scoped, tag = 'internal scratch']
  %s0 = inlined_call_operand.vmem [shape: f32[16,4], index: 0, kind: input, shape index: {}]
  %s1 = inlined_call_operand.vmem [shape: f32[4,6], index: 1, kind: input, shape index: {}]
  %s2 = inlined_call_operand.vmem [shape: f32[1,6], index: 2, kind: input, shape index: {}]
  %s3 = inlined_call_operand.vmem [shape: f32[6,6], index: 3, kind: input, shape index: {}]
  %s4 = inlined_call_operand.vmem [shape: f32[1,6], index: 4, kind: input, shape index: {}]
  %s5 = inlined_call_operand.vmem [shape: f32[6,4], index: 5, kind: input, shape index: {}]
  %s6 = inlined_call_operand.vmem [shape: f32[1,4], index: 6, kind: input, shape index: {}]
  %s7 = inlined_call_operand.hbm [shape: f32[16,16], index: 7, kind: output, shape index: {}]
  %s8 = sld [smem:[#allocation0]]
  $region38: #{tpu_custom_call.1} parent=0
    _
  %s10 = ssub.s32 1, %s8
  %s11 = scalar_select 0, %s10, %s8
  $region1: #{tpu_custom_call.1} parent=0
    #allocation2 [shape = 'u8[8192]{0}', space=vmem, size = 0x2000, scoped, tag = 'output window, operand 0, single buffered']
    #allocation3 [shape = 's32[1]{0}', space=sflag, size = 0x4, scoped, tag = 'scoped memory for tpu_custom_call.1']
    %12 = vsyncpa [#allocation3], 0
    // Predicated region
    $region2: #{tpu_custom_call.1} parent=1 // pred_check
      _
    $region3: #{tpu_custom_call.1} parent=1 // pred_check_branch
      %14 = sbr.rel (0) target = $region5
    $region4: #{tpu_custom_call.1} parent=1 // pred_region
      _
    $region5: #{tpu_custom_call.1} parent=1 // pred_fallthru
      _
    // Predicated region
    $region6: #{tpu_custom_call.1} parent=1 // pred_check
      _
    $region7: #{tpu_custom_call.1} parent=1 // pred_check_branch
      %16 = sbr.rel (0) target = $region9
    $region8: #{tpu_custom_call.1} parent=1 // pred_region
      _
    $region9: #{tpu_custom_call.1} parent=1 // pred_fallthru
      _
    // Predicated region
    $region10: #{tpu_custom_call.1} parent=1 // pred_check
      _
    $region11: #{tpu_custom_call.1} parent=1 // pred_check_branch
      %18 = sbr.rel (0) target = $region13
    $region12: #{tpu_custom_call.1} parent=1 // pred_region
      _
    $region13: #{tpu_custom_call.1} parent=1 // pred_fallthru
      _
    // Predicated region
    $region14: #{tpu_custom_call.1} parent=1 // pred_check
      _
    $region15: #{tpu_custom_call.1} parent=1 // pred_check_branch
      %20 = sbr.rel (0) target = $region17
    $region16: #{tpu_custom_call.1} parent=1 // pred_region
      _
    $region17: #{tpu_custom_call.1} parent=1 // pred_fallthru
      _
    // Predicated region
    $region18: #{tpu_custom_call.1} parent=1 // pred_check
      _
    $region19: #{tpu_custom_call.1} parent=1 // pred_check_branch
      %22 = sbr.rel (0) target = $region21
    $region20: #{tpu_custom_call.1} parent=1 // pred_region
      _
    $region21: #{tpu_custom_call.1} parent=1 // pred_fallthru
      _
    // Predicated region
    $region22: #{tpu_custom_call.1} parent=1 // pred_check
      _
    $region23: #{tpu_custom_call.1} parent=1 // pred_check_branch
      %24 = sbr.rel (0) target = $region25
    $region24: #{tpu_custom_call.1} parent=1 // pred_region
      _
    $region25: #{tpu_custom_call.1} parent=1 // pred_fallthru
      _
    // Predicated region
    $region26: #{tpu_custom_call.1} parent=1 // pred_check
      _
    $region27: #{tpu_custom_call.1} parent=1 // pred_check_branch
      %26 = sbr.rel (0) target = $region29
    $region28: #{tpu_custom_call.1} parent=1 // pred_region
      _
    $region29: #{tpu_custom_call.1} parent=1 // pred_fallthru
      _
    %v28 = vld [vmem:[%s0] sm:$0xff]
    %v29 = vld [vmem:[%s0 + $0x8] sm:$0xff]
    %v30 = vld [vmem:[%s1] sm:$0xf]
    %v31 = vld [vmem:[%s2] sm:$0x1]
    %v32 = vld [vmem:[%s3] sm:$0x3f]
    %v33 = vld [vmem:[%s4] sm:$0x1]
    %v34 = vld [vmem:[%s5] sm:$0x3f]
    %v35 = vld [vmem:[%s6] sm:$0x1]
    %v37 = vlaneseq
    %v38 = vshrl.u32 %v37, 7
    %v39 = vsub.s32 0, %v38
    %v40 = vrot.slane %v31, %v39
    %vm42 = vcmask 31744
    %v44 = vsel %vm42, %v28, 0
    %v47 = vsel %vm42, %v29, 0
    %vm49 = vcmask 1043456
    %v51 = vsel %vm49, %v30, 0
    %53 = vmatprep.subr.mxu0 0.0
    %54 = vmatpush1.msra.mxu0 %v51
    %55 = vmatprep.subr.mxu0 0.0
    %56 = vmatpush1.msra.mxu0 0.0
    %57 = vmatprep.subr.mxu0 0.0
    %58 = vmatpush1.msra.mxu0 0.0
    %59 = vmatprep.subr.mxu0 0.0
    %60 = vmatpush1.msra.mxu0 0.0
    %61 = vmatprep.subr.mxu0 0.0
    %62 = vmatpush1.msra.mxu0 0.0
    %63 = vmatprep.subr.mxu0 0.0
    %64 = vmatpush1.msra.mxu0 0.0
    %65 = vmatprep.subr.mxu0 0.0
    %66 = vmatpush1.msra.mxu0 0.0
    %67 = vmatprep.subr.mxu0 0.0
    %68 = vmatpush1.msra.mxu0 0.0
    %69 = vmatprep.subr.mxu0 0.0
    %70 = vmatpush1.msra.mxu0 0.0
    %71 = vmatprep.subr.mxu0 0.0
    %72 = vmatpush1.msra.mxu0 0.0
    %73 = vmatprep.subr.mxu0 0.0
    %74 = vmatpush1.msra.mxu0 0.0
    %75 = vmatprep.subr.mxu0 0.0
    %76 = vmatpush1.msra.mxu0 0.0
    %77 = vmatprep.subr.mxu0 0.0
    %78 = vmatpush1.msra.mxu0 0.0
    %79 = vmatprep.subr.mxu0 0.0
    %80 = vmatpush1.msra.mxu0 0.0
    %81 = vmatprep.subr.mxu0 0.0
    %82 = vmatpush1.msra.mxu0 0.0
    %83 = vmatprep.subr.mxu0 0.0
    %84 = vmatpush1.msra.mxu0 0.0
    %85 = vmatprep.subr.mxu0 0.0
    %86 = vmatpush1.msra.mxu0 0.0
    %87 = vmatprep.subr.mxu0 0.0
    %88 = vmatpush1.msra.mxu0 0.0
    %89 = vmatprep.subr.mxu0 0.0
    %90 = vmatpush1.msra.mxu0 0.0
    %91 = vmatprep.subr.mxu0 0.0
    %92 = vmatpush1.msra.mxu0 0.0
    %93 = vmatprep.subr.mxu0 0.0
    %94 = vmatpush1.msra.mxu0 0.0
    %95 = vmatprep.subr.mxu0 0.0
    %96 = vmatpush1.msra.mxu0 0.0
    %97 = vmatprep.subr.mxu0 0.0
    %98 = vmatpush1.msra.mxu0 0.0
    %99 = vmatprep.subr.mxu0 0.0
    %100 = vmatpush1.msra.mxu0 0.0
    %101 = vmatprep.subr.mxu0 0.0
    %102 = vmatpush1.msra.mxu0 0.0
    %103 = vmatprep.subr.mxu0 0.0
    %104 = vmatpush1.msra.mxu0 0.0
    %105 = vmatprep.subr.mxu0 0.0
    %106 = vmatpush1.msra.mxu0 0.0
    %107 = vmatprep.subr.mxu0 0.0
    %108 = vmatpush1.msra.mxu0 0.0
    %109 = vmatprep.subr.mxu0 0.0
    %110 = vmatpush1.msra.mxu0 0.0
    %111 = vmatprep.subr.mxu0 0.0
    %112 = vmatpush1.msra.mxu0 0.0
    %113 = vmatprep.subr.mxu0 0.0
    %114 = vmatpush1.msra.mxu0 0.0
    %115 = vmatprep.subr.mxu0 0.0
    %116 = vmatpush1.msra.mxu0 0.0
    %117 = vmatprep.mubr.f32.mxu0 0.0
    %118 = vmatmul.mubr.f32.gmra.mrb[0].mxu0 %v44
    %v119 = vpop.f32.mrb[0].mxu0
    %v120 = vadd.f32 %v40, %v119
    %v121 = vpop.f32.mrb[0].mxu0
    %122 = vmatprep.mubr.f32.mxu0 0.0
    %123 = vmatmul.mubr.f32.gmra.mrb[0].mxu0 %v47
    %v124 = vpop.f32.mrb[0].mxu0
    %v125 = vadd.f32 %v40, %v124
    %v126 = vpop.f32.mrb[0].mxu0
    %127 = vdwg.mxu0
    %v128 = vmax.f32 %v120, 0.0
    %v129 = vmax.f32 %v125, 0.0
    %v131 = vlaneseq
    %v132 = vshrl.u32 %v131, 7
    %v133 = vsub.s32 0, %v132
    %v134 = vrot.slane %v33, %v133
    %vm136 = vcmask 48128
    %v138 = vsel %vm136, %v128, 0
    %v141 = vsel %vm136, %v129, 0
    %vm143 = vcmask 1045504
    %v145 = vsel %vm143, %v32, 0
    %147 = vmatprep.subr.mxu0 0.0
    %148 = vmatpush1.msra.mxu0 %v145
    %149 = vmatprep.subr.mxu0 0.0
    %150 = vmatpush1.msra.mxu0 0.0
    %151 = vmatprep.subr.mxu0 0.0
    %152 = vmatpush1.msra.mxu0 0.0
    %153 = vmatprep.subr.mxu0 0.0
    %154 = vmatpush1.msra.mxu0 0.0
    %155 = vmatprep.subr.mxu0 0.0
    %156 = vmatpush1.msra.mxu0 0.0
    %157 = vmatprep.subr.mxu0 0.0
    %158 = vmatpush1.msra.mxu0 0.0
    %159 = vmatprep.subr.mxu0 0.0
    %160 = vmatpush1.msra.mxu0 0.0
    %161 = vmatprep.subr.mxu0 0.0
    %162 = vmatpush1.msra.mxu0 0.0
    %163 = vmatprep.subr.mxu0 0.0
    %164 = vmatpush1.msra.mxu0 0.0
    %165 = vmatprep.subr.mxu0 0.0
    %166 = vmatpush1.msra.mxu0 0.0
    %167 = vmatprep.subr.mxu0 0.0
    %168 = vmatpush1.msra.mxu0 0.0
    %169 = vmatprep.subr.mxu0 0.0
    %170 = vmatpush1.msra.mxu0 0.0
    %171 = vmatprep.subr.mxu0 0.0
    %172 = vmatpush1.msra.mxu0 0.0
    %173 = vmatprep.subr.mxu0 0.0
    %174 = vmatpush1.msra.mxu0 0.0
    %175 = vmatprep.subr.mxu0 0.0
    %176 = vmatpush1.msra.mxu0 0.0
    %177 = vmatprep.subr.mxu0 0.0
    %178 = vmatpush1.msra.mxu0 0.0
    %179 = vmatprep.subr.mxu0 0.0
    %180 = vmatpush1.msra.mxu0 0.0
    %181 = vmatprep.subr.mxu0 0.0
    %182 = vmatpush1.msra.mxu0 0.0
    %183 = vmatprep.subr.mxu0 0.0
    %184 = vmatpush1.msra.mxu0 0.0
    %185 = vmatprep.subr.mxu0 0.0
    %186 = vmatpush1.msra.mxu0 0.0
    %187 = vmatprep.subr.mxu0 0.0
    %188 = vmatpush1.msra.mxu0 0.0
    %189 = vmatprep.subr.mxu0 0.0
    %190 = vmatpush1.msra.mxu0 0.0
    %191 = vmatprep.subr.mxu0 0.0
    %192 = vmatpush1.msra.mxu0 0.0
    %193 = vmatprep.subr.mxu0 0.0
    %194 = vmatpush1.msra.mxu0 0.0
    %195 = vmatprep.subr.mxu0 0.0
    %196 = vmatpush1.msra.mxu0 0.0
    %197 = vmatprep.subr.mxu0 0.0
    %198 = vmatpush1.msra.mxu0 0.0
    %199 = vmatprep.subr.mxu0 0.0
    %200 = vmatpush1.msra.mxu0 0.0
    %201 = vmatprep.subr.mxu0 0.0
    %202 = vmatpush1.msra.mxu0 0.0
    %203 = vmatprep.subr.mxu0 0.0
    %204 = vmatpush1.msra.mxu0 0.0
    %205 = vmatprep.subr.mxu0 0.0
    %206 = vmatpush1.msra.mxu0 0.0
    %207 = vmatprep.subr.mxu0 0.0
    %208 = vmatpush1.msra.mxu0 0.0
    %209 = vmatprep.subr.mxu0 0.0
    %210 = vmatpush1.msra.mxu0 0.0
    %211 = vmatprep.mubr.f32.mxu0 0.0
    %212 = vmatmul.mubr.f32.gmra.mrb[0].mxu0 %v138
    %v213 = vpop.f32.mrb[0].mxu0
    %v214 = vadd.f32 %v134, %v213
    %v215 = vpop.f32.mrb[0].mxu0
    %216 = vmatprep.mubr.f32.mxu0 0.0
    %217 = vmatmul.mubr.f32.gmra.mrb[0].mxu0 %v141
    %v218 = vpop.f32.mrb[0].mxu0
    %v219 = vadd.f32 %v134, %v218
    %v220 = vpop.f32.mrb[0].mxu0
    %221 = vdwg.mxu0
    %v222 = vmax.f32 %v214, 0.0
    %v223 = vmax.f32 %v219, 0.0
    %v225 = vlaneseq
    %v226 = vshrl.u32 %v225, 7
    %v227 = vsub.s32 0, %v226
    %v228 = vrot.slane %v35, %v227
    %v231 = vsel %vm136, %v222, 0
    %v234 = vsel %vm136, %v223, 0
    %v237 = vsel %vm143, %v34, 0
    %239 = vmatprep.subr.mxu0 0.0
    %240 = vmatpush1.msra.mxu0 %v237
    %241 = vmatprep.subr.mxu0 0.0
    %242 = vmatpush1.msra.mxu0 0.0
    %243 = vmatprep.subr.mxu0 0.0
    %244 = vmatpush1.msra.mxu0 0.0
    %245 = vmatprep.subr.mxu0 0.0
    %246 = vmatpush1.msra.mxu0 0.0
    %247 = vmatprep.subr.mxu0 0.0
    %248 = vmatpush1.msra.mxu0 0.0
    %249 = vmatprep.subr.mxu0 0.0
    %250 = vmatpush1.msra.mxu0 0.0
    %251 = vmatprep.subr.mxu0 0.0
    %252 = vmatpush1.msra.mxu0 0.0
    %253 = vmatprep.subr.mxu0 0.0
    %254 = vmatpush1.msra.mxu0 0.0
    %255 = vmatprep.subr.mxu0 0.0
    %256 = vmatpush1.msra.mxu0 0.0
    %257 = vmatprep.subr.mxu0 0.0
    %258 = vmatpush1.msra.mxu0 0.0
    %259 = vmatprep.subr.mxu0 0.0
    %260 = vmatpush1.msra.mxu0 0.0
    %261 = vmatprep.subr.mxu0 0.0
    %262 = vmatpush1.msra.mxu0 0.0
    %263 = vmatprep.subr.mxu0 0.0
    %264 = vmatpush1.msra.mxu0 0.0
    %265 = vmatprep.subr.mxu0 0.0
    %266 = vmatpush1.msra.mxu0 0.0
    %267 = vmatprep.subr.mxu0 0.0
    %268 = vmatpush1.msra.mxu0 0.0
    %269 = vmatprep.subr.mxu0 0.0
    %270 = vmatpush1.msra.mxu0 0.0
    %271 = vmatprep.subr.mxu0 0.0
    %272 = vmatpush1.msra.mxu0 0.0
    %273 = vmatprep.subr.mxu0 0.0
    %274 = vmatpush1.msra.mxu0 0.0
    %275 = vmatprep.subr.mxu0 0.0
    %276 = vmatpush1.msra.mxu0 0.0
    %277 = vmatprep.subr.mxu0 0.0
    %278 = vmatpush1.msra.mxu0 0.0
    %279 = vmatprep.subr.mxu0 0.0
    %280 = vmatpush1.msra.mxu0 0.0
    %281 = vmatprep.subr.mxu0 0.0
    %282 = vmatpush1.msra.mxu0 0.0
    %283 = vmatprep.subr.mxu0 0.0
    %284 = vmatpush1.msra.mxu0 0.0
    %285 = vmatprep.subr.mxu0 0.0
    %286 = vmatpush1.msra.mxu0 0.0
    %287 = vmatprep.subr.mxu0 0.0
    %288 = vmatpush1.msra.mxu0 0.0
    %289 = vmatprep.subr.mxu0 0.0
    %290 = vmatpush1.msra.mxu0 0.0
    %291 = vmatprep.subr.mxu0 0.0
    %292 = vmatpush1.msra.mxu0 0.0
    %293 = vmatprep.subr.mxu0 0.0
    %294 = vmatpush1.msra.mxu0 0.0
    %295 = vmatprep.subr.mxu0 0.0
    %296 = vmatpush1.msra.mxu0 0.0
    %297 = vmatprep.subr.mxu0 0.0
    %298 = vmatpush1.msra.mxu0 0.0
    %299 = vmatprep.subr.mxu0 0.0
    %300 = vmatpush1.msra.mxu0 0.0
    %301 = vmatprep.subr.mxu0 0.0
    %302 = vmatpush1.msra.mxu0 0.0
    %303 = vmatprep.mubr.f32.mxu0 0.0
    %304 = vmatmul.mubr.f32.gmra.mrb[0].mxu0 %v231
    %v305 = vpop.f32.mrb[0].mxu0
    %v306 = vadd.f32 %v228, %v305
    %v307 = vpop.f32.mrb[0].mxu0
    %308 = vmatprep.mubr.f32.mxu0 0.0
    %309 = vmatmul.mubr.f32.gmra.mrb[0].mxu0 %v234
    %v310 = vpop.f32.mrb[0].mxu0
    %v311 = vadd.f32 %v228, %v310
    %v312 = vpop.f32.mrb[0].mxu0
    %313 = vdwg.mxu0
    %v314 = vmul.f32 %v306, 0.5
    %v315 = vmul.f32 %v311, 0.5
    %v316 = vand.u32 2147483647, %v314
    %vm317 = vcmp.le.f32.partialorder %v316, 0.7853982
    %vm318 = vcmp.lt.s32.totalorder %v314, 0
    %v319 = vand.u32 %v314, 2139095040
    %v320 = vshrl.u32 %v319, 23
    %v321 = vsub.s32 %v320, 127
    %v322 = vand.u32 2147483647, %v314
    %v323 = vand.u32 %v322, 8388607
    %v324 = vor.u32 %v323, 8388608
    %v325 = vsub.s32 0, %v324
    %v326 = vadd.s32 %v321, 1
    %vm327 = vcmp.gt.s32.totalorder %v326, 0
    %v328 = vsel %vm327, %v326, 0
    %v329 = vshrl.u32 %v328, 5
    %v330 = vand.u32 %v328, 31
    %v331 = vsub.s32 32, %v330
    %v332 = vshrl.u32 683565275, %v331
    %v333 = vshll.u32 683565275, %v330
    %v334 = vshrl.u32 2475754826, %v331
    %v335 = vor.u32 %v333, %v334
    %v336 = vshll.u32 2475754826, %v330
    %v337 = vshrl.u32 2131351028, %v331
    %v338 = vor.u32 %v336, %v337
    %v339 = vshll.u32 2131351028, %v330
    %v340 = vshrl.u32 2102212464, %v331
    %v341 = vor.u32 %v339, %v340
    %v342 = vshll.u32 2102212464, %v330
    %v343 = vshrl.u32 920167782, %v331
    %v344 = vor.u32 %v342, %v343
    %v345 = vshll.u32 920167782, %v330
    %v346 = vshrl.u32 1326507024, %v331
    %v347 = vor.u32 %v345, %v346
    %vm348 = vcmp.lt.s32.totalorder %v329, 1
    %vm349 = vcmp.lt.s32.totalorder %v329, 2
    %vm350 = vcmp.lt.s32.totalorder %v329, 3
    %vm351 = vcmp.lt.s32.totalorder %v329, 4
    %v352 = vsel %vm348, %v332, %v335
    %v353 = vsel %vm351, %v341, 2102212464
    %v354 = vsel %vm350, %v338, %v353
    %v355 = vsel %vm349, %v352, %v354
    %v356 = vsel %vm348, %v335, %v338
    %v357 = vsel %vm351, %v344, 920167782
    %v358 = vsel %vm350, %v341, %v357
    %v359 = vsel %vm349, %v356, %v358
    %v360 = vsel %vm348, %v338, %v341
    %v361 = vsel %vm351, %v347, 1326507024
    %v362 = vsel %vm350, %v344, %v361
    %v363 = vsel %vm349, %v360, %v362
    %v364 = vshll.u32 %v324, 8
    %v365 = vmul.u32.u64.compose %v364, %v363
    %v366 = vextract.low.u32 %v365
    %v367 = vextract.high.u32 %v365
    %v368 = vmul.u32.u64.compose %v364, %v359
    %v369 = vextract.low.u32 %v368
    %v370 = vextract.high.u32 %v368
    %v371 = vmul.u32 %v364, %v355
    %v372 = vadd.s32 %v367, %v369
    %vm373 = vc.u32 %v367, %v369
    %v374 = vadd.s32 %v370, 1
    %v375 = vsel %vm373, %v374, %v370
    %v376 = vadd.s32 %v371, %v375
    %v377 = vadd.s32 %v376, 536870912
    %v378 = vshrl.u32 %v377, 30
    %v379 = vshll.u32 %v378, 30
    %v380 = vsub.s32 %v376, %v379
    %vm381 = vcmp.lt.s32.totalorder %v380, 0
    %v382 = vsub.s32 0, %v380
    %v383 = vsel %vm381, %v382, %v380
    %v384 = vclz %v383
    %v385 = vsub.s32 %v384, 2
    %vm386 = vcmp.gt.s32.totalorder 0, %v385
    %v387 = vsel %vm386, 0, %v385
    %v388 = vsub.s32 32, %v387
    %v389 = vshll.u32 %v380, %v387
    %v390 = vshrl.u32 %v372, %v388
    %v391 = vor.u32 %v389, %v390
    %v392 = vsub.s32 4294967266, %v387
    %v393 = vadd.s32 %v392, 127
    %v394 = vshll.u32 %v393, 23
    %v395 = vor.u32 4788187, %v394
    %v396 = vand.u32 2147483647, %v395
    %v398 = vcvt.s32.f32 %v391
    %v399 = vmul.f32 %v398, %v396
    %v400 = vxor.u32 %v399, 2147483648
    %v401 = vsel %vm318, %v400, %v399
    %v402 = vsub.s32 4, %v378
    %v403 = vsel %vm318, %v402, %v378
    %v404 = vsel %vm317, %v314, %v401
    %v405 = vsel %vm317, 0, %v403
    %v406 = vcosq.f32.pop %v404
    %v407 = vsinq.f32.pop %v404
    %vm408 = vweird.f32 %v314
    %v409 = vand.u32 %v405, 3
    %vm410 = vcmp.lt.s32.totalorder %v409, 2
    %vm411 = vcmp.eq.s32.totalorder %v409, 0
    %v412 = vxor.u32 %v407, 2147483648
    %v413 = vsel %vm411, %v406, %v412
    %vm414 = vcmp.eq.s32.totalorder %v409, 2
    %v415 = vxor.u32 %v406, 2147483648
    %v416 = vsel %vm414, %v415, %v407
    %v417 = vsel %vm410, %v413, %v416
    %v418 = vsel %vm408, nan, %v417
    %v419 = vand.u32 2147483647, %v315
    %vm420 = vcmp.le.f32.partialorder %v419, 0.7853982
    %vm421 = vcmp.lt.s32.totalorder %v315, 0
    %v422 = vand.u32 %v315, 2139095040
    %v423 = vshrl.u32 %v422, 23
    %v424 = vsub.s32 %v423, 127
    %v425 = vand.u32 2147483647, %v315
    %v426 = vand.u32 %v425, 8388607
    %v427 = vor.u32 %v426, 8388608
    %v428 = vsub.s32 0, %v427
    %v429 = vadd.s32 %v424, 1
    %vm430 = vcmp.gt.s32.totalorder %v429, 0
    %v431 = vsel %vm430, %v429, 0
    %v432 = vshrl.u32 %v431, 5
    %v433 = vand.u32 %v431, 31
    %v434 = vsub.s32 32, %v433
    %v435 = vshrl.u32 683565275, %v434
    %v436 = vshll.u32 683565275, %v433
    %v437 = vshrl.u32 2475754826, %v434
    %v438 = vor.u32 %v436, %v437
    %v439 = vshll.u32 2475754826, %v433
    %v440 = vshrl.u32 2131351028, %v434
    %v441 = vor.u32 %v439, %v440
    %v442 = vshll.u32 2131351028, %v433
    %v443 = vshrl.u32 2102212464, %v434
    %v444 = vor.u32 %v442, %v443
    %v445 = vshll.u32 2102212464, %v433
    %v446 = vshrl.u32 920167782, %v434
    %v447 = vor.u32 %v445, %v446
    %v448 = vshll.u32 920167782, %v433
    %v449 = vshrl.u32 1326507024, %v434
    %v450 = vor.u32 %v448, %v449
    %vm451 = vcmp.lt.s32.totalorder %v432, 1
    %vm452 = vcmp.lt.s32.totalorder %v432, 2
    %vm453 = vcmp.lt.s32.totalorder %v432, 3
    %vm454 = vcmp.lt.s32.totalorder %v432, 4
    %v455 = vsel %vm451, %v435, %v438
    %v456 = vsel %vm454, %v444, 2102212464
    %v457 = vsel %vm453, %v441, %v456
    %v458 = vsel %vm452, %v455, %v457
    %v459 = vsel %vm451, %v438, %v441
    %v460 = vsel %vm454, %v447, 920167782
    %v461 = vsel %vm453, %v444, %v460
    %v462 = vsel %vm452, %v459, %v461
    %v463 = vsel %vm451, %v441, %v444
    %v464 = vsel %vm454, %v450, 1326507024
    %v465 = vsel %vm453, %v447, %v464
    %v466 = vsel %vm452, %v463, %v465
    %v467 = vshll.u32 %v427, 8
    %v468 = vmul.u32.u64.compose %v467, %v466
    %v469 = vextract.low.u32 %v468
    %v470 = vextract.high.u32 %v468
    %v471 = vmul.u32.u64.compose %v467, %v462
    %v472 = vextract.low.u32 %v471
    %v473 = vextract.high.u32 %v471
    %v474 = vmul.u32 %v467, %v458
    %v475 = vadd.s32 %v470, %v472
    %vm476 = vc.u32 %v470, %v472
    %v477 = vadd.s32 %v473, 1
    %v478 = vsel %vm476, %v477, %v473
    %v479 = vadd.s32 %v474, %v478
    %v480 = vadd.s32 %v479, 536870912
    %v481 = vshrl.u32 %v480, 30
    %v482 = vshll.u32 %v481, 30
    %v483 = vsub.s32 %v479, %v482
    %vm484 = vcmp.lt.s32.totalorder %v483, 0
    %v485 = vsub.s32 0, %v483
    %v486 = vsel %vm484, %v485, %v483
    %v487 = vclz %v486
    %v488 = vsub.s32 %v487, 2
    %vm489 = vcmp.gt.s32.totalorder 0, %v488
    %v490 = vsel %vm489, 0, %v488
    %v491 = vsub.s32 32, %v490
    %v492 = vshll.u32 %v483, %v490
    %v493 = vshrl.u32 %v475, %v491
    %v494 = vor.u32 %v492, %v493
    %v495 = vsub.s32 4294967266, %v490
    %v496 = vadd.s32 %v495, 127
    %v497 = vshll.u32 %v496, 23
    %v498 = vor.u32 4788187, %v497
    %v499 = vand.u32 2147483647, %v498
    %v501 = vcvt.s32.f32 %v494
    %v502 = vmul.f32 %v501, %v499
    %v503 = vxor.u32 %v502, 2147483648
    %v504 = vsel %vm421, %v503, %v502
    %v505 = vsub.s32 4, %v481
    %v506 = vsel %vm421, %v505, %v481
    %v507 = vsel %vm420, %v315, %v504
    %v508 = vsel %vm420, 0, %v506
    %v509 = vcosq.f32.pop %v507
    %v510 = vsinq.f32.pop %v507
    %vm511 = vweird.f32 %v315
    %v512 = vand.u32 %v508, 3
    %vm513 = vcmp.lt.s32.totalorder %v512, 2
    %vm514 = vcmp.eq.s32.totalorder %v512, 0
    %v515 = vxor.u32 %v510, 2147483648
    %v516 = vsel %vm514, %v509, %v515
    %vm517 = vcmp.eq.s32.totalorder %v512, 2
    %v518 = vxor.u32 %v509, 2147483648
    %v519 = vsel %vm517, %v518, %v510
    %v520 = vsel %vm513, %v516, %v519
    %v521 = vsel %vm511, nan, %v520
    %v522 = vand.u32 2147483647, %v314
    %vm523 = vcmp.le.f32.partialorder %v522, 0.7853982
    %vm524 = vcmp.lt.s32.totalorder %v314, 0
    %v525 = vand.u32 %v314, 2139095040
    %v526 = vshrl.u32 %v525, 23
    %v527 = vsub.s32 %v526, 127
    %v528 = vand.u32 2147483647, %v314
    %v529 = vand.u32 %v528, 8388607
    %v530 = vor.u32 %v529, 8388608
    %v531 = vsub.s32 0, %v530
    %v532 = vadd.s32 %v527, 1
    %vm533 = vcmp.gt.s32.totalorder %v532, 0
    %v534 = vsel %vm533, %v532, 0
    %v535 = vshrl.u32 %v534, 5
    %v536 = vand.u32 %v534, 31
    %v537 = vsub.s32 32, %v536
    %v538 = vshrl.u32 683565275, %v537
    %v539 = vshll.u32 683565275, %v536
    %v540 = vshrl.u32 2475754826, %v537
    %v541 = vor.u32 %v539, %v540
    %v542 = vshll.u32 2475754826, %v536
    %v543 = vshrl.u32 2131351028, %v537
    %v544 = vor.u32 %v542, %v543
    %v545 = vshll.u32 2131351028, %v536
    %v546 = vshrl.u32 2102212464, %v537
    %v547 = vor.u32 %v545, %v546
    %v548 = vshll.u32 2102212464, %v536
    %v549 = vshrl.u32 920167782, %v537
    %v550 = vor.u32 %v548, %v549
    %v551 = vshll.u32 920167782, %v536
    %v552 = vshrl.u32 1326507024, %v537
    %v553 = vor.u32 %v551, %v552
    %vm554 = vcmp.lt.s32.totalorder %v535, 1
    %vm555 = vcmp.lt.s32.totalorder %v535, 2
    %vm556 = vcmp.lt.s32.totalorder %v535, 3
    %vm557 = vcmp.lt.s32.totalorder %v535, 4
    %v558 = vsel %vm554, %v538, %v541
    %v559 = vsel %vm557, %v547, 2102212464
    %v560 = vsel %vm556, %v544, %v559
    %v561 = vsel %vm555, %v558, %v560
    %v562 = vsel %vm554, %v541, %v544
    %v563 = vsel %vm557, %v550, 920167782
    %v564 = vsel %vm556, %v547, %v563
    %v565 = vsel %vm555, %v562, %v564
    %v566 = vsel %vm554, %v544, %v547
    %v567 = vsel %vm557, %v553, 1326507024
    %v568 = vsel %vm556, %v550, %v567
    %v569 = vsel %vm555, %v566, %v568
    %v570 = vshll.u32 %v530, 8
    %v571 = vmul.u32.u64.compose %v570, %v569
    %v572 = vextract.low.u32 %v571
    %v573 = vextract.high.u32 %v571
    %v574 = vmul.u32.u64.compose %v570, %v565
    %v575 = vextract.low.u32 %v574
    %v576 = vextract.high.u32 %v574
    %v577 = vmul.u32 %v570, %v561
    %v578 = vadd.s32 %v573, %v575
    %vm579 = vc.u32 %v573, %v575
    %v580 = vadd.s32 %v576, 1
    %v581 = vsel %vm579, %v580, %v576
    %v582 = vadd.s32 %v577, %v581
    %v583 = vadd.s32 %v582, 536870912
    %v584 = vshrl.u32 %v583, 30
    %v585 = vshll.u32 %v584, 30
    %v586 = vsub.s32 %v582, %v585
    %vm587 = vcmp.lt.s32.totalorder %v586, 0
    %v588 = vsub.s32 0, %v586
    %v589 = vsel %vm587, %v588, %v586
    %v590 = vclz %v589
    %v591 = vsub.s32 %v590, 2
    %vm592 = vcmp.gt.s32.totalorder 0, %v591
    %v593 = vsel %vm592, 0, %v591
    %v594 = vsub.s32 32, %v593
    %v595 = vshll.u32 %v586, %v593
    %v596 = vshrl.u32 %v578, %v594
    %v597 = vor.u32 %v595, %v596
    %v598 = vsub.s32 4294967266, %v593
    %v599 = vadd.s32 %v598, 127
    %v600 = vshll.u32 %v599, 23
    %v601 = vor.u32 4788187, %v600
    %v602 = vand.u32 2147483647, %v601
    %v604 = vcvt.s32.f32 %v597
    %v605 = vmul.f32 %v604, %v602
    %v606 = vxor.u32 %v605, 2147483648
    %v607 = vsel %vm524, %v606, %v605
    %v608 = vsub.s32 4, %v584
    %v609 = vsel %vm524, %v608, %v584
    %v610 = vsel %vm523, %v314, %v607
    %v611 = vsel %vm523, 0, %v609
    %v612 = vcosq.f32.pop %v610
    %v613 = vsinq.f32.pop %v610
    %vm614 = vweird.f32 %v314
    %v615 = vadd.s32 %v611, 3
    %v616 = vand.u32 %v615, 3
    %vm617 = vcmp.lt.s32.totalorder %v616, 2
    %vm618 = vcmp.eq.s32.totalorder %v616, 0
    %v619 = vxor.u32 %v613, 2147483648
    %v620 = vsel %vm618, %v612, %v619
    %vm621 = vcmp.eq.s32.totalorder %v616, 2
    %v622 = vxor.u32 %v612, 2147483648
    %v623 = vsel %vm621, %v622, %v613
    %v624 = vsel %vm617, %v620, %v623
    %v625 = vsel %vm614, nan, %v624
    %v626 = vand.u32 2147483647, %v315
    %vm627 = vcmp.le.f32.partialorder %v626, 0.7853982
    %vm628 = vcmp.lt.s32.totalorder %v315, 0
    %v629 = vand.u32 %v315, 2139095040
    %v630 = vshrl.u32 %v629, 23
    %v631 = vsub.s32 %v630, 127
    %v632 = vand.u32 2147483647, %v315
    %v633 = vand.u32 %v632, 8388607
    %v634 = vor.u32 %v633, 8388608
    %v635 = vsub.s32 0, %v634
    %v636 = vadd.s32 %v631, 1
    %vm637 = vcmp.gt.s32.totalorder %v636, 0
    %v638 = vsel %vm637, %v636, 0
    %v639 = vshrl.u32 %v638, 5
    %v640 = vand.u32 %v638, 31
    %v641 = vsub.s32 32, %v640
    %v642 = vshrl.u32 683565275, %v641
    %v643 = vshll.u32 683565275, %v640
    %v644 = vshrl.u32 2475754826, %v641
    %v645 = vor.u32 %v643, %v644
    %v646 = vshll.u32 2475754826, %v640
    %v647 = vshrl.u32 2131351028, %v641
    %v648 = vor.u32 %v646, %v647
    %v649 = vshll.u32 2131351028, %v640
    %v650 = vshrl.u32 2102212464, %v641
    %v651 = vor.u32 %v649, %v650
    %v652 = vshll.u32 2102212464, %v640
    %v653 = vshrl.u32 920167782, %v641
    %v654 = vor.u32 %v652, %v653
    %v655 = vshll.u32 920167782, %v640
    %v656 = vshrl.u32 1326507024, %v641
    %v657 = vor.u32 %v655, %v656
    %vm658 = vcmp.lt.s32.totalorder %v639, 1
    %vm659 = vcmp.lt.s32.totalorder %v639, 2
    %vm660 = vcmp.lt.s32.totalorder %v639, 3
    %vm661 = vcmp.lt.s32.totalorder %v639, 4
    %v662 = vsel %vm658, %v642, %v645
    %v663 = vsel %vm661, %v651, 2102212464
    %v664 = vsel %vm660, %v648, %v663
    %v665 = vsel %vm659, %v662, %v664
    %v666 = vsel %vm658, %v645, %v648
    %v667 = vsel %vm661, %v654, 920167782
    %v668 = vsel %vm660, %v651, %v667
    %v669 = vsel %vm659, %v666, %v668
    %v670 = vsel %vm658, %v648, %v651
    %v671 = vsel %vm661, %v657, 1326507024
    %v672 = vsel %vm660, %v654, %v671
    %v673 = vsel %vm659, %v670, %v672
    %v674 = vshll.u32 %v634, 8
    %v675 = vmul.u32.u64.compose %v674, %v673
    %v676 = vextract.low.u32 %v675
    %v677 = vextract.high.u32 %v675
    %v678 = vmul.u32.u64.compose %v674, %v669
    %v679 = vextract.low.u32 %v678
    %v680 = vextract.high.u32 %v678
    %v681 = vmul.u32 %v674, %v665
    %v682 = vadd.s32 %v677, %v679
    %vm683 = vc.u32 %v677, %v679
    %v684 = vadd.s32 %v680, 1
    %v685 = vsel %vm683, %v684, %v680
    %v686 = vadd.s32 %v681, %v685
    %v687 = vadd.s32 %v686, 536870912
    %v688 = vshrl.u32 %v687, 30
    %v689 = vshll.u32 %v688, 30
    %v690 = vsub.s32 %v686, %v689
    %vm691 = vcmp.lt.s32.totalorder %v690, 0
    %v692 = vsub.s32 0, %v690
    %v693 = vsel %vm691, %v692, %v690
    %v694 = vclz %v693
    %v695 = vsub.s32 %v694, 2
    %vm696 = vcmp.gt.s32.totalorder 0, %v695
    %v697 = vsel %vm696, 0, %v695
    %v698 = vsub.s32 32, %v697
    %v699 = vshll.u32 %v690, %v697
    %v700 = vshrl.u32 %v682, %v698
    %v701 = vor.u32 %v699, %v700
    %v702 = vsub.s32 4294967266, %v697
    %v703 = vadd.s32 %v702, 127
    %v704 = vshll.u32 %v703, 23
    %v705 = vor.u32 4788187, %v704
    %v706 = vand.u32 2147483647, %v705
    %v708 = vcvt.s32.f32 %v701
    %v709 = vmul.f32 %v708, %v706
    %v710 = vxor.u32 %v709, 2147483648
    %v711 = vsel %vm628, %v710, %v709
    %v712 = vsub.s32 4, %v688
    %v713 = vsel %vm628, %v712, %v688
    %v714 = vsel %vm627, %v315, %v711
    %v715 = vsel %vm627, 0, %v713
    %v716 = vcosq.f32.pop %v714
    %v717 = vsinq.f32.pop %v714
    %vm718 = vweird.f32 %v315
    %v719 = vadd.s32 %v715, 3
    %v720 = vand.u32 %v719, 3
    %vm721 = vcmp.lt.s32.totalorder %v720, 2
    %vm722 = vcmp.eq.s32.totalorder %v720, 0
    %v723 = vxor.u32 %v717, 2147483648
    %v724 = vsel %vm722, %v716, %v723
    %vm725 = vcmp.eq.s32.totalorder %v720, 2
    %v726 = vxor.u32 %v716, 2147483648
    %v727 = vsel %vm725, %v726, %v717
    %v728 = vsel %vm721, %v724, %v727
    %v729 = vsel %vm718, nan, %v728
    %v730 = vlaneseq
    %v731 = vand.u32 %v730, 127
    %v732 = vshra.s32 %v731, 3
    %v733 = vand.u32 %v732, 1
    %vm734 = vcmp.eq.s32.totalorder %v733, 1
    %736 = vset.pattern.permute.xlu0 0
    %737 = vperm.xlu0 %736, %v625
    %v738 = vpop.permute.xlu0 %737
    %741 = vset.pattern.permute.xlu0 0
    %742 = vperm.xlu0 %741, %v729
    %v743 = vpop.permute.xlu0 %742
    %746 = vset.pattern.permute.xlu0 0
    %747 = vperm.xlu0 %746, %v418
    %v748 = vpop.permute.xlu0 %747
    %751 = vset.pattern.permute.xlu0 0
    %752 = vperm.xlu0 %751, %v521
    %v753 = vpop.permute.xlu0 %752
    %v755 = vsel %vm734, %v738, %v748
    %v756 = vsel %vm734, %v743, %v753
    %v757 = vshra.s32 %v731, 2
    %v758 = vand.u32 %v757, 1
    %vm759 = vcmp.eq.s32.totalorder %v758, 1
    %760 = vset.pattern.permute.xlu0 1
    %761 = vperm.xlu0 %760, %v625
    %v762 = vpop.permute.xlu0 %761
    %764 = vset.pattern.permute.xlu0 1
    %765 = vperm.xlu0 %764, %v729
    %v766 = vpop.permute.xlu0 %765
    %768 = vset.pattern.permute.xlu0 1
    %769 = vperm.xlu0 %768, %v418
    %v770 = vpop.permute.xlu0 %769
    %772 = vset.pattern.permute.xlu0 1
    %773 = vperm.xlu0 %772, %v521
    %v774 = vpop.permute.xlu0 %773
    %v776 = vsel %vm759, %v762, %v770
    %v777 = vsel %vm759, %v766, %v774
    %v778 = vmul.f32 %v755, %v776
    %v779 = vmul.f32 %v756, %v777
    %v780 = vshra.s32 %v731, 1
    %v781 = vand.u32 %v780, 1
    %vm782 = vcmp.eq.s32.totalorder %v781, 1
    %783 = vset.pattern.permute.xlu0 2
    %784 = vperm.xlu0 %783, %v625
    %v785 = vpop.permute.xlu0 %784
    %787 = vset.pattern.permute.xlu0 2
    %788 = vperm.xlu0 %787, %v729
    %v789 = vpop.permute.xlu0 %788
    %791 = vset.pattern.permute.xlu0 2
    %792 = vperm.xlu0 %791, %v418
    %v793 = vpop.permute.xlu0 %792
    %795 = vset.pattern.permute.xlu0 2
    %796 = vperm.xlu0 %795, %v521
    %v797 = vpop.permute.xlu0 %796
    %v799 = vsel %vm782, %v785, %v793
    %v800 = vsel %vm782, %v789, %v797
    %v801 = vmul.f32 %v778, %v799
    %v802 = vmul.f32 %v779, %v800
    %v803 = vand.u32 %v731, 1
    %vm804 = vcmp.eq.s32.totalorder %v803, 1
    %805 = vset.pattern.permute.xlu0 3
    %806 = vperm.xlu0 %805, %v625
    %v807 = vpop.permute.xlu0 %806
    %809 = vset.pattern.permute.xlu0 3
    %810 = vperm.xlu0 %809, %v729
    %v811 = vpop.permute.xlu0 %810
    %813 = vset.pattern.permute.xlu0 3
    %814 = vperm.xlu0 %813, %v418
    %v815 = vpop.permute.xlu0 %814
    %817 = vset.pattern.permute.xlu0 3
    %818 = vperm.xlu0 %817, %v521
    %v819 = vpop.permute.xlu0 %818
    %v821 = vsel %vm804, %v807, %v815
    %v822 = vsel %vm804, %v811, %v819
    %v823 = vmul.f32 %v801, %v821
    %v824 = vmul.f32 %v802, %v822
    %v825 = vlaneseq
    %v826 = vshrl.u32 %v825, 7
    %v827 = vadd.s32 %v826, 8
    %vm828 = vcmp.lt.s32.totalorder %v826, 8
    %vm829 = vcmp.lt.s32.totalorder %v827, 8
    %v830 = vsel %vm828, 0.125, -0.125
    %v831 = vsel %vm829, 0.125, -0.125
    %v832 = vmul.f32 %v823, %v830
    %v833 = vmul.f32 %v824, %v831
    %v834 = vpack.c.bf16 %v833, %v832
    %v835 = vpack.c.bf16 %v824, %v823
    %836 = vxpose.xlu0.c.b16.start [1/8] %v834, 128
    %837 = vxpose.xlu0.c.b16.cont [2/8] 0, 128
    %838 = vxpose.xlu0.c.b16.cont [3/8] 0, 128
    %839 = vxpose.xlu0.c.b16.cont [4/8] 0, 128
    %840 = vxpose.xlu0.c.b16.cont [5/8] 0, 128
    %841 = vxpose.xlu0.c.b16.cont [6/8] 0, 128
    %842 = vxpose.xlu0.c.b16.cont [7/8] 0, 128
    %843 = vxpose.xlu0.c.b16.end [8/8] 0, 128
    %v844 = vpop.trf.xlu0
    %v845 = vpop.trf.xlu0
    %v846 = vpop.trf.xlu0
    %v847 = vpop.trf.xlu0
    %v848 = vpop.trf.xlu0
    %v849 = vpop.trf.xlu0
    %v850 = vpop.trf.xlu0
    %v851 = vpop.trf.xlu0
    %vm852 = vcmask 130048
    %v854 = vsel %vm852, %v844, 0
    %856 = vmatprep.subr.bf16.mxu0 0
    %857 = vmatpush1.bf16.msra.mxu0 %v835
    %858 = vmatprep.subr.bf16.mxu0 0
    %859 = vmatpush1.bf16.msra.mxu0 0
    %860 = vmatprep.subr.bf16.mxu0 0
    %861 = vmatpush1.bf16.msra.mxu0 0
    %862 = vmatprep.subr.bf16.mxu0 0
    %863 = vmatpush1.bf16.msra.mxu0 0
    %864 = vmatprep.subr.bf16.mxu0 0
    %865 = vmatpush1.bf16.msra.mxu0 0
    %866 = vmatprep.subr.bf16.mxu0 0
    %867 = vmatpush1.bf16.msra.mxu0 0
    %868 = vmatprep.subr.bf16.mxu0 0
    %869 = vmatpush1.bf16.msra.mxu0 0
    %870 = vmatprep.subr.bf16.mxu0 0
    %871 = vmatpush1.bf16.msra.mxu0 0
    %872 = vmatprep.subr.bf16.mxu0 0
    %873 = vmatpush1.bf16.msra.mxu0 0
    %874 = vmatprep.subr.bf16.mxu0 0
    %875 = vmatpush1.bf16.msra.mxu0 0
    %876 = vmatprep.subr.bf16.mxu0 0
    %877 = vmatpush1.bf16.msra.mxu0 0
    %878 = vmatprep.subr.bf16.mxu0 0
    %879 = vmatpush1.bf16.msra.mxu0 0
    %880 = vmatprep.subr.bf16.mxu0 0
    %881 = vmatpush1.bf16.msra.mxu0 0
    %882 = vmatprep.subr.bf16.mxu0 0
    %883 = vmatpush1.bf16.msra.mxu0 0
    %884 = vmatprep.subr.bf16.mxu0 0
    %885 = vmatpush1.bf16.msra.mxu0 0
    %886 = vmatprep.subr.bf16.mxu0 0
    %887 = vmatpush1.bf16.msra.mxu0 0
    %888 = vmatprep.mubr.bf16.mxu0 0
    %889 = vmatmul.mubr.bf16.gmra.mrb[0].mxu0 %v854
    %v890 = vpop.f32.mrb[0].mxu0
    %v891 = vadd.f32 0.0, %v890
    %v892 = vpop.f32.mrb[0].mxu0
    %v893 = vpop.f32.mrb[0].mxu0
    %v894 = vadd.f32 0.0, %v893
    %v895 = vpop.f32.mrb[0].mxu0
    %896 = vdwg.mxu0
    %897 = vst.msk [vmem:[#allocation2] sm:$0xff] %vm852, %v891
    %898 = vst.msk [vmem:[#allocation2 + $0x8] sm:$0xff] %vm852, %v894
    // Predicated region
    $region30: #{tpu_custom_call.1} parent=1 // pred_check
      _
    $region31: #{tpu_custom_call.1} parent=1 // pred_check_branch
      %900 = sbr.rel (0) target = $region33
    $region32: #{tpu_custom_call.1} parent=1 // pred_region
      %s902 = ssub.s32 256, 256
      %903 = vsyncadd [#allocation3], %s902
      %s904 = sshll.u32 [#allocation2], 4
      %s905 = int_to_ptr.vmem [resolvable:$true] %s904
      %910 = dma.vmem_to_hbm [thread:$0]  %s905, 256, %s7, [#allocation3], 128, 128, 8
    $region33: #{tpu_custom_call.1} parent=1 // pred_fallthru
      _
    // Predicated region
    $region34: #{tpu_custom_call.1} parent=1 // pred_check
      _
    $region35: #{tpu_custom_call.1} parent=1 // pred_check_branch
      %912 = sbr.rel (0) target = $region37
    $region36: #{tpu_custom_call.1} parent=1 // pred_region
      %913 = dma.done [#allocation3], 256
    $region37: #{tpu_custom_call.1} parent=1 // pred_fallthru
      _
    %914 = vsyncpa [#allocation3], 1

</llo_original>
